<compile_context>
chip_gen: v7x
topology: tpu7x:2x2x1
jax: 0.10.0
libtpu: 0.0.40
codegen_flags: <defaults>
</compile_context>

<pallas_src>
import functools

import jax
import jax.numpy as jnp
from jax.experimental import pallas as pl
from jax.experimental.pallas import tpu as pltpu


def _round_up(x: int, m: int) -> int:
    return ((x + m - 1) // m) * m


def _pad_to(a, shape):
    pads = [(0, t - s) for s, t in zip(a.shape, shape)]
    return jnp.pad(a, pads) if any(p[1] for p in pads) else a


def _qfunction_kernel(x_ref, w1_ref, b1_ref, w2_ref, b2_ref, w3_ref, b3_ref,
                      out_ref):
    # Layer 1: (obs||action) @ W1 + b1, ReLU.  bf16 operands, f32 accumulation.
    h1 = jnp.dot(x_ref[...], w1_ref[...],
                 preferred_element_type=jnp.float32) + b1_ref[...]
    h1 = jnp.maximum(h1, 0.0)

    # Layer 2: h1 @ W2 + b2, ReLU.
    h2 = jnp.dot(h1.astype(w2_ref.dtype), w2_ref[...],
                 preferred_element_type=jnp.float32) + b2_ref[...]
    h2 = jnp.maximum(h2, 0.0)

    # Layer 3 (out_features == 1): VPU multiply + XLU row reduction instead of a
    # 1-column MXU matmul.  b3 is a scalar read from SMEM.
    q = jnp.sum(h2 * w3_ref[...], axis=-1, keepdims=True) + b3_ref[0]
    out_ref[...] = q.astype(out_ref.dtype)


@functools.partial(jax.jit, static_argnames=("tile_b", "compute_dtype"))
def qfunction_forward(obs, action, params, *, tile_b=1024,
                      compute_dtype=jnp.bfloat16):
    """Q(obs, action) through the 3-layer MLP, batch-tiled over a Pallas grid."""
    assert obs.shape[0] == action.shape[0]
    w1, b1, w2, b2, w3, b3 = params

    B = obs.shape[0]
    in_dim = obs.shape[1] + action.shape[1]
    H = w1.shape[1]
    Hp = _round_up(max(H, 1), 128)          # lane-align the hidden dim

    # ---- operand prep (tiny; weights are resident, zero-padding is exact) ----
    w1p = _pad_to(w1, (in_dim, Hp)).astype(compute_dtype)
    b1p = _pad_to(b1.reshape(1, H), (1, Hp)).astype(jnp.float32)
    w2p = _pad_to(w2, (Hp, Hp)).astype(compute_dtype)
    b2p = _pad_to(b2.reshape(1, H), (1, Hp)).astype(jnp.float32)
    w3p = _pad_to(w3.reshape(1, H), (1, Hp)).astype(jnp.float32)
    b3p = b3.reshape(1).astype(jnp.float32)

    # Concat once in the wrapper -> a single K=in_dim matmul in the kernel.
    x = jnp.concatenate([obs, action], axis=1).astype(compute_dtype)

    # ---- batch tiling ---------------------------------------------------------
    tile = max(8, min(int(tile_b), _round_up(B, 8)))
    tile = _round_up(tile, 8)
    padded_b = _round_up(B, tile)
    if padded_b != B:
        x = jnp.pad(x, ((0, padded_b - B), (0, 0)))
    grid = (padded_b // tile,)

    block_row = lambda i: (i, 0)     # streams with the grid
    block_const = lambda i: (0, 0)   # stays VMEM-resident across steps

    out = pl.pallas_call(
        _qfunction_kernel,
        out_shape=jax.ShapeDtypeStruct((padded_b, 1), jnp.float32),
        grid=grid,
        in_specs=[
            pl.BlockSpec((tile, in_dim), block_row),            # obs||action rows
            pl.BlockSpec((in_dim, Hp), block_const),            # W1
            pl.BlockSpec((1, Hp), block_const),                 # b1
            pl.BlockSpec((Hp, Hp), block_const),                # W2
            pl.BlockSpec((1, Hp), block_const),                 # b2
            pl.BlockSpec((1, Hp), block_const),                 # w3 (row vector)
            pl.BlockSpec(memory_space=pltpu.MemorySpace.SMEM),  # b3 scalar
        ],
        out_specs=pl.BlockSpec((tile, 1), block_row),
        compiler_params=pltpu.CompilerParams(
            dimension_semantics=("parallel",),                  # megacore on v7x
            vmem_limit_bytes=32 * 1024 * 1024,
        ),
    )(x, w1p, b1p, w2p, b2p, w3p, b3p)

    return out[:B]


def init_params(key, obs_dim, action_dim, hidden_dim):
    """PyTorch-nn.Linear-style uniform init; weights stored as (in, out)."""
    in_dim = obs_dim + action_dim
    ks = jax.random.split(key, 6)

    def unif(k, shape, fan_in):
        bound = 1.0 / float(fan_in) ** 0.5
        return jax.random.uniform(k, shape, jnp.float32, -bound, bound)

    w1 = unif(ks[0], (in_dim, hidden_dim), in_dim)
    b1 = unif(ks[1], (hidden_dim,), in_dim)
    w2 = unif(ks[2], (hidden_dim, hidden_dim), hidden_dim)
    b2 = unif(ks[3], (hidden_dim,), hidden_dim)
    w3 = unif(ks[4], (hidden_dim,), hidden_dim)
    b3 = unif(ks[5], (1,), hidden_dim)
    return (w1, b1, w2, b2, w3, b3)


def _reference_f32(obs, action, params):
    """Plain f32 reference matching the PyTorch module."""
    w1, b1, w2, b2, w3, b3 = params
    x = jnp.concatenate([obs, action], axis=1)
    h1 = jnp.maximum(x @ w1 + b1, 0.0)
    h2 = jnp.maximum(h1 @ w2 + b2, 0.0)
    return h2 @ w3[:, None] + b3


def _reference_mixed(obs, action, params, compute_dtype=jnp.bfloat16):
    """Mirrors the kernel's dtype strategy (bf16 matmul operands, f32 accum)."""
    w1, b1, w2, b2, w3, b3 = params
    x = jnp.concatenate([obs, action], axis=1).astype(compute_dtype)
    h1 = jnp.maximum(
        jnp.dot(x, w1.astype(compute_dtype),
                preferred_element_type=jnp.float32) + b1[None, :], 0.0)
    h2 = jnp.maximum(
        jnp.dot(h1.astype(compute_dtype), w2.astype(compute_dtype),
                preferred_element_type=jnp.float32) + b2[None, :], 0.0)
    return jnp.sum(h2 * w3[None, :], axis=-1, keepdims=True) + b3


if __name__ == "__main__":
    obs_dim, action_dim, hidden_dim = 16, 8, 32
    batch = 2

    key = jax.random.PRNGKey(0)
    k_obs, k_act, k_par = jax.random.split(key, 3)

    obs = jax.random.normal(k_obs, (batch, obs_dim), jnp.float32)
    action = jax.random.normal(k_act, (batch, action_dim), jnp.float32)
    params = init_params(k_par, obs_dim, action_dim, hidden_dim)

    q = jax.block_until_ready(qfunction_forward(obs, action, params))
    assert q.shape == (batch, 1)
    assert jnp.allclose(q, _reference_mixed(obs, action, params),
                        atol=1e-2, rtol=1e-2)
    assert jnp.allclose(q, _reference_f32(obs, action, params),
                        atol=1e-1, rtol=5e-2)

    # Also exercise the multi-step grid + batch-padding path.
    batch2 = 300
    k_obs2, k_act2 = jax.random.split(jax.random.PRNGKey(1))
    obs2 = jax.random.normal(k_obs2, (batch2, obs_dim), jnp.float32)
    act2 = jax.random.normal(k_act2, (batch2, action_dim), jnp.float32)
    q2 = jax.block_until_ready(
        qfunction_forward(obs2, act2, params, tile_b=128))
    assert q2.shape == (batch2, 1)
    assert jnp.allclose(q2, _reference_mixed(obs2, act2, params),
                        atol=1e-2, rtol=1e-2)
    assert jnp.allclose(q2, _reference_f32(obs2, act2, params),
                        atol=1e-1, rtol=5e-2)

    print("KERNEL_OK")
</pallas_src>

<mosaic_0001>
module attributes {stable_mosaic.version = 11 : i64} {
  func.func @_qfunction_kernel(%arg0: i32, %arg1: memref<8x24xbf16, #tpu.memory_space<vmem>>, %arg2: memref<24x128xbf16, #tpu.memory_space<vmem>>, %arg3: memref<1x128xf32, #tpu.memory_space<vmem>>, %arg4: memref<128x128xbf16, #tpu.memory_space<vmem>>, %arg5: memref<1x128xf32, #tpu.memory_space<vmem>>, %arg6: memref<1x128xf32, #tpu.memory_space<vmem>>, %arg7: memref<1xf32, #tpu.memory_space<smem>>, %arg8: memref<8x1xf32, #tpu.memory_space<vmem>>) attributes {dimension_semantics = [#tpu.dimension_semantics<parallel>], iteration_bounds = array<i64: 1>, scalar_prefetch = 0 : i64, scratch_operands = 0 : i64, tpu.core_type = #tpu.core_type<tc>, window_params = [{transform_indices = @transform_0, window_bounds = array<i64: 8, 24>}, {pipeline_mode = #tpu.pipeline_mode<synchronous>, transform_indices = @transform_1, window_bounds = array<i64: 24, 128>}, {pipeline_mode = #tpu.pipeline_mode<synchronous>, transform_indices = @transform_2, window_bounds = array<i64: 1, 128>}, {pipeline_mode = #tpu.pipeline_mode<synchronous>, transform_indices = @transform_3, window_bounds = array<i64: 128, 128>}, {pipeline_mode = #tpu.pipeline_mode<synchronous>, transform_indices = @transform_4, window_bounds = array<i64: 1, 128>}, {pipeline_mode = #tpu.pipeline_mode<synchronous>, transform_indices = @transform_5, window_bounds = array<i64: 1, 128>}, {transform_indices = @transform_6, window_bounds = array<i64: 1>}, {transform_indices = @transform_7, window_bounds = array<i64: 8, 1>}]} {
    %c0 = arith.constant 0 : index
    %c0_0 = arith.constant 0 : index
    %0 = vector.load %arg1[%c0, %c0_0] : memref<8x24xbf16, #tpu.memory_space<vmem>>, vector<8x24xbf16>
    %c0_1 = arith.constant 0 : index
    %c0_2 = arith.constant 0 : index
    %1 = vector.load %arg2[%c0_1, %c0_2] : memref<24x128xbf16, #tpu.memory_space<vmem>>, vector<24x128xbf16>
    %cst = arith.constant dense<0.000000e+00> : vector<8x128xf32>
    %2 = tpu.matmul %0, %1, %cst {dimension_numbers = #tpu.dot_dimension_numbers<[1], [0], [0], [1], [0, 0, 1, 1], [], []>} : vector<8x24xbf16>, vector<24x128xbf16>, vector<8x128xf32> -> vector<8x128xf32>
    %c0_3 = arith.constant 0 : index
    %c0_4 = arith.constant 0 : index
    %3 = vector.load %arg3[%c0_3, %c0_4] : memref<1x128xf32, #tpu.memory_space<vmem>>, vector<1x128xf32>
    %4 = vector.broadcast %3 : vector<1x128xf32> to vector<8x128xf32>
    %5 = arith.addf %2, %4 : vector<8x128xf32>
    %cst_5 = arith.constant 0.000000e+00 : f32
    %6 = vector.broadcast %cst_5 : f32 to vector<8x128xf32>
    %7 = arith.maximumf %5, %6 : vector<8x128xf32>
    %8 = arith.truncf %7 : vector<8x128xf32> to vector<8x128xbf16>
    %c0_6 = arith.constant 0 : index
    %c0_7 = arith.constant 0 : index
    %9 = vector.load %arg4[%c0_6, %c0_7] : memref<128x128xbf16, #tpu.memory_space<vmem>>, vector<128x128xbf16>
    %cst_8 = arith.constant dense<0.000000e+00> : vector<8x128xf32>
    %10 = tpu.matmul %8, %9, %cst_8 {dimension_numbers = #tpu.dot_dimension_numbers<[1], [0], [0], [1], [0, 0, 1, 1], [], []>} : vector<8x128xbf16>, vector<128x128xbf16>, vector<8x128xf32> -> vector<8x128xf32>
    %c0_9 = arith.constant 0 : index
    %c0_10 = arith.constant 0 : index
    %11 = vector.load %arg5[%c0_9, %c0_10] : memref<1x128xf32, #tpu.memory_space<vmem>>, vector<1x128xf32>
    %12 = vector.broadcast %11 : vector<1x128xf32> to vector<8x128xf32>
    %13 = arith.addf %10, %12 : vector<8x128xf32>
    %cst_11 = arith.constant 0.000000e+00 : f32
    %14 = vector.broadcast %cst_11 : f32 to vector<8x128xf32>
    %15 = arith.maximumf %13, %14 : vector<8x128xf32>
    %c0_12 = arith.constant 0 : index
    %c0_13 = arith.constant 0 : index
    %16 = vector.load %arg6[%c0_12, %c0_13] : memref<1x128xf32, #tpu.memory_space<vmem>>, vector<1x128xf32>
    %17 = vector.broadcast %16 : vector<1x128xf32> to vector<8x128xf32>
    %18 = arith.mulf %15, %17 : vector<8x128xf32>
    %cst_14 = arith.constant dense<0.000000e+00> : vector<8xf32>
    %19 = vector.multi_reduction <add>, %18, %cst_14 [1] : vector<8x128xf32> to vector<8xf32>
    %20 = vector.shape_cast %19 : vector<8xf32> to vector<8x1xf32>
    %c0_15 = arith.constant 0 : index
    %21 = memref.load %arg7[%c0_15] : memref<1xf32, #tpu.memory_space<smem>>
    %22 = vector.broadcast %21 : f32 to vector<8x1xf32>
    %23 = arith.addf %20, %22 : vector<8x1xf32>
    %c0_16 = arith.constant 0 : index
    %c0_17 = arith.constant 0 : index
    %24 = vector.load %arg8[%c0_16, %c0_17] : memref<8x1xf32, #tpu.memory_space<vmem>>, vector<8x1xf32>
    tpu.vector_store %arg8[%c0_16, %c0_17], %23 {strides = array<i32>} : memref<8x1xf32, #tpu.memory_space<vmem>>, vector<8x1xf32>,
    return
  }
  func.func @transform_0(%arg0: i32) -> (i32, i32) {
    %c0_i32 = arith.constant 0 : i32
    %c0_i32_0 = arith.constant 0 : i32
    return %arg0, %c0_i32 : i32, i32
  }
  func.func @transform_1(%arg0: i32) -> (i32, i32) {
    %c0_i32 = arith.constant 0 : i32
    %c0_i32_0 = arith.constant 0 : i32
    %c0_i32_1 = arith.constant 0 : i32
    return %c0_i32, %c0_i32_0 : i32, i32
  }
  func.func @transform_2(%arg0: i32) -> (i32, i32) {
    %c0_i32 = arith.constant 0 : i32
    %c0_i32_0 = arith.constant 0 : i32
    %c0_i32_1 = arith.constant 0 : i32
    return %c0_i32, %c0_i32_0 : i32, i32
  }
  func.func @transform_3(%arg0: i32) -> (i32, i32) {
    %c0_i32 = arith.constant 0 : i32
    %c0_i32_0 = arith.constant 0 : i32
    %c0_i32_1 = arith.constant 0 : i32
    return %c0_i32, %c0_i32_0 : i32, i32
  }
  func.func @transform_4(%arg0: i32) -> (i32, i32) {
    %c0_i32 = arith.constant 0 : i32
    %c0_i32_0 = arith.constant 0 : i32
    %c0_i32_1 = arith.constant 0 : i32
    return %c0_i32, %c0_i32_0 : i32, i32
  }
  func.func @transform_5(%arg0: i32) -> (i32, i32) {
    %c0_i32 = arith.constant 0 : i32
    %c0_i32_0 = arith.constant 0 : i32
    %c0_i32_1 = arith.constant 0 : i32
    return %c0_i32, %c0_i32_0 : i32, i32
  }
  func.func @transform_6(%arg0: i32) -> i32 {
    %c0_i32 = arith.constant 0 : i32
    %c0_i32_0 = arith.constant 0 : i32
    return %c0_i32 : i32
  }
  func.func @transform_7(%arg0: i32) -> (i32, i32) {
    %c0_i32 = arith.constant 0 : i32
    %c0_i32_0 = arith.constant 0 : i32
    return %arg0, %c0_i32 : i32, i32
  }
}

</mosaic_0001>

<llo_original>
// kernel: qfunction_forward.1
$region0: #{qfunction_forward.1}
  #allocation0 [shape = 'u32[]', space=smem, size = 0x4, offset = 0x4, fixed_abs, tag = 'smem constant byte address 0x4 - core index']
  #allocation1 [shape = 'u32[144,128]{1,0:T(1,128)}', space=vmem, size = 0x12000, scoped, tag = 'internal scratch']
  #allocation2 [shape = 'f32[1]{0:T(128)S(6)}', space=smem, size = 0x200, scoped, tag = 'scoped memory for qfunction_forward.1']
  %s0 = inlined_call_operand.vmem [shape: bf16[8,24], index: 0, kind: input, shape index: {}]
  %s1 = inlined_call_operand.vmem [shape: bf16[24,128], index: 1, kind: input, shape index: {}]
  %s2 = inlined_call_operand.vmem [shape: f32[1,128], index: 2, kind: input, shape index: {}]
  %s3 = inlined_call_operand.vmem [shape: bf16[128,128], index: 3, kind: input, shape index: {}]
  %s4 = inlined_call_operand.vmem [shape: f32[1,128], index: 4, kind: input, shape index: {}]
  %s5 = inlined_call_operand.vmem [shape: f32[1,128], index: 5, kind: input, shape index: {}]
  %s6 = inlined_call_operand.<no memory space> [shape: f32[1], index: 6, kind: input, shape index: {}]
  %s7 = inlined_call_operand.vmem [shape: f32[8,1], index: 7, kind: output, shape index: {}]
  %s8 = sld [smem:[#allocation0]]
  $region38: #{qfunction_forward.1} parent=0
    _
  %s10 = ssub.s32 1, %s8
  %s11 = scalar_select 0, %s10, %s8
  %12 = sst [smem:[#allocation2]] %s6
  // Predicated region
  $region2: #{qfunction_forward.1} parent=0 // pred_check
    _
  $region3: #{qfunction_forward.1} parent=0 // pred_check_branch
    %14 = sbr.rel (0) target = $region5
  $region4: #{qfunction_forward.1} parent=0 // pred_region
    _
  $region5: #{qfunction_forward.1} parent=0 // pred_fallthru
    _
  // Predicated region
  $region6: #{qfunction_forward.1} parent=0 // pred_check
    _
  $region7: #{qfunction_forward.1} parent=0 // pred_check_branch
    %16 = sbr.rel (0) target = $region9
  $region8: #{qfunction_forward.1} parent=0 // pred_region
    _
  $region9: #{qfunction_forward.1} parent=0 // pred_fallthru
    _
  // Predicated region
  $region10: #{qfunction_forward.1} parent=0 // pred_check
    _
  $region11: #{qfunction_forward.1} parent=0 // pred_check_branch
    %18 = sbr.rel (0) target = $region13
  $region12: #{qfunction_forward.1} parent=0 // pred_region
    _
  $region13: #{qfunction_forward.1} parent=0 // pred_fallthru
    _
  // Predicated region
  $region14: #{qfunction_forward.1} parent=0 // pred_check
    _
  $region15: #{qfunction_forward.1} parent=0 // pred_check_branch
    %20 = sbr.rel (0) target = $region17
  $region16: #{qfunction_forward.1} parent=0 // pred_region
    _
  $region17: #{qfunction_forward.1} parent=0 // pred_fallthru
    _
  // Predicated region
  $region18: #{qfunction_forward.1} parent=0 // pred_check
    _
  $region19: #{qfunction_forward.1} parent=0 // pred_check_branch
    %22 = sbr.rel (0) target = $region21
  $region20: #{qfunction_forward.1} parent=0 // pred_region
    _
  $region21: #{qfunction_forward.1} parent=0 // pred_fallthru
    _
  // Predicated region
  $region22: #{qfunction_forward.1} parent=0 // pred_check
    _
  $region23: #{qfunction_forward.1} parent=0 // pred_check_branch
    %24 = sbr.rel (0) target = $region25
  $region24: #{qfunction_forward.1} parent=0 // pred_region
    _
  $region25: #{qfunction_forward.1} parent=0 // pred_fallthru
    _
  // Predicated region
  $region26: #{qfunction_forward.1} parent=0 // pred_check
    _
  $region27: #{qfunction_forward.1} parent=0 // pred_check_branch
    %26 = sbr.rel (0) target = $region29
  $region28: #{qfunction_forward.1} parent=0 // pred_region
    _
  $region29: #{qfunction_forward.1} parent=0 // pred_fallthru
    _
  %v28 = vld [vmem:[%s0] sm:$0xf]
  %v29 = vld [vmem:[%s1] sm:$0xf]
  %v30 = vld [vmem:[%s1 + $0x4] sm:$0xf]
  %v31 = vld [vmem:[%s1 + $0x8] sm:$0xf]
  %v32 = vld [vmem:[%s2] sm:$0x1]
  %v34 = vlaneseq
  %v35 = vshrl.u32 %v34, 7
  %v36 = vsub.s32 0, %v35
  %v37 = vrot.slane %v32, %v36
  %v42 = vunpack.c.l.b16 %v29
  %v43 = vunpack.c.l.b16 %v30
  %v44 = vunpack.c.l.b16 %v31
  %v45 = vpack.c.b16 %v43, %v42
  %v46 = vpack.c.b16 %v44, %v44
  %vm48 = vcmask 195584
  %v50 = vsel %vm48, %v28, 0
  %vm52 = vcmask 1043456
  %v54 = vsel %vm52, %v46, 0
  %56 = vmatprep.subr.bf16.mxu0 0
  %57 = vmatpush1.bf16.msra.mxu0 %v45
  %58 = vmatprep.subr.bf16.mxu0 0
  %59 = vmatpush1.bf16.msra.mxu0 %v54
  %60 = vmatprep.subr.bf16.mxu0 0
  %61 = vmatpush1.bf16.msra.mxu0 0
  %62 = vmatprep.subr.bf16.mxu0 0
  %63 = vmatpush1.bf16.msra.mxu0 0
  %64 = vmatprep.subr.bf16.mxu0 0
  %65 = vmatpush1.bf16.msra.mxu0 0
  %66 = vmatprep.subr.bf16.mxu0 0
  %67 = vmatpush1.bf16.msra.mxu0 0
  %68 = vmatprep.subr.bf16.mxu0 0
  %69 = vmatpush1.bf16.msra.mxu0 0
  %70 = vmatprep.subr.bf16.mxu0 0
  %71 = vmatpush1.bf16.msra.mxu0 0
  %72 = vmatprep.subr.bf16.mxu0 0
  %73 = vmatpush1.bf16.msra.mxu0 0
  %74 = vmatprep.subr.bf16.mxu0 0
  %75 = vmatpush1.bf16.msra.mxu0 0
  %76 = vmatprep.subr.bf16.mxu0 0
  %77 = vmatpush1.bf16.msra.mxu0 0
  %78 = vmatprep.subr.bf16.mxu0 0
  %79 = vmatpush1.bf16.msra.mxu0 0
  %80 = vmatprep.subr.bf16.mxu0 0
  %81 = vmatpush1.bf16.msra.mxu0 0
  %82 = vmatprep.subr.bf16.mxu0 0
  %83 = vmatpush1.bf16.msra.mxu0 0
  %84 = vmatprep.subr.bf16.mxu0 0
  %85 = vmatpush1.bf16.msra.mxu0 0
  %86 = vmatprep.subr.bf16.mxu0 0
  %87 = vmatpush1.bf16.msra.mxu0 0
  %88 = vmatprep.mubr.bf16.mxu0 0
  %89 = vmatmul.mubr.bf16.gmra.mrb[0].mxu0 %v50
  %v90 = vpop.f32.mrb[0].mxu0
  %v91 = vadd.f32 %v37, %v90
  %v92 = vpop.f32.mrb[0].mxu0
  %v93 = vpop.f32.mrb[0].mxu0
  %v94 = vpop.f32.mrb[0].mxu0
  %95 = vdwg.mxu0
  %v96 = vmax.f32 %v91, 0.0
  %v97 = vpack.c.bf16 %v96, %v96
  %v98 = vld [vmem:[%s3] sm:$0xf]
  %v99 = vld [vmem:[%s3 + $0x4] sm:$0xf]
  %v100 = vld [vmem:[%s3 + $0x8] sm:$0xf]
  %v101 = vld [vmem:[%s3 + $0xc] sm:$0xf]
  %v102 = vld [vmem:[%s3 + $0x10] sm:$0xf]
  %v103 = vld [vmem:[%s3 + $0x14] sm:$0xf]
  %v104 = vld [vmem:[%s3 + $0x18] sm:$0xf]
  %v105 = vld [vmem:[%s3 + $0x1c] sm:$0xf]
  %v106 = vld [vmem:[%s3 + $0x20] sm:$0xf]
  %v107 = vld [vmem:[%s3 + $0x24] sm:$0xf]
  %v108 = vld [vmem:[%s3 + $0x28] sm:$0xf]
  %v109 = vld [vmem:[%s3 + $0x2c] sm:$0xf]
  %v110 = vld [vmem:[%s3 + $0x30] sm:$0xf]
  %v111 = vld [vmem:[%s3 + $0x34] sm:$0xf]
  %v112 = vld [vmem:[%s3 + $0x38] sm:$0xf]
  %v113 = vld [vmem:[%s3 + $0x3c] sm:$0xf]
  %v114 = vld [vmem:[%s4] sm:$0x1]
  %v116 = vlaneseq
  %v117 = vshrl.u32 %v116, 7
  %v118 = vsub.s32 0, %v117
  %v119 = vrot.slane %v114, %v118
  %v137 = vunpack.c.l.b16 %v98
  %v138 = vunpack.c.l.b16 %v99
  %v139 = vunpack.c.l.b16 %v100
  %v140 = vunpack.c.l.b16 %v101
  %v141 = vunpack.c.l.b16 %v102
  %v142 = vunpack.c.l.b16 %v103
  %v143 = vunpack.c.l.b16 %v104
  %v144 = vunpack.c.l.b16 %v105
  %v145 = vunpack.c.l.b16 %v106
  %v146 = vunpack.c.l.b16 %v107
  %v147 = vunpack.c.l.b16 %v108
  %v148 = vunpack.c.l.b16 %v109
  %v149 = vunpack.c.l.b16 %v110
  %v150 = vunpack.c.l.b16 %v111
  %v151 = vunpack.c.l.b16 %v112
  %v152 = vunpack.c.l.b16 %v113
  %v153 = vpack.c.b16 %v138, %v137
  %v154 = vpack.c.b16 %v140, %v139
  %v155 = vpack.c.b16 %v142, %v141
  %v156 = vpack.c.b16 %v144, %v143
  %v157 = vpack.c.b16 %v146, %v145
  %v158 = vpack.c.b16 %v148, %v147
  %v159 = vpack.c.b16 %v150, %v149
  %v160 = vpack.c.b16 %v152, %v151
  %169 = vmatprep.subr.bf16.mxu0 0
  %170 = vmatpush1.bf16.msra.mxu0 %v153
  %171 = vmatprep.subr.bf16.mxu0 0
  %172 = vmatpush1.bf16.msra.mxu0 %v154
  %173 = vmatprep.subr.bf16.mxu0 0
  %174 = vmatpush1.bf16.msra.mxu0 %v155
  %175 = vmatprep.subr.bf16.mxu0 0
  %176 = vmatpush1.bf16.msra.mxu0 %v156
  %177 = vmatprep.subr.bf16.mxu0 0
  %178 = vmatpush1.bf16.msra.mxu0 %v157
  %179 = vmatprep.subr.bf16.mxu0 0
  %180 = vmatpush1.bf16.msra.mxu0 %v158
  %181 = vmatprep.subr.bf16.mxu0 0
  %182 = vmatpush1.bf16.msra.mxu0 %v159
  %183 = vmatprep.subr.bf16.mxu0 0
  %184 = vmatpush1.bf16.msra.mxu0 %v160
  %185 = vmatprep.subr.bf16.mxu0 0
  %186 = vmatpush1.bf16.msra.mxu0 0
  %187 = vmatprep.subr.bf16.mxu0 0
  %188 = vmatpush1.bf16.msra.mxu0 0
  %189 = vmatprep.subr.bf16.mxu0 0
  %190 = vmatpush1.bf16.msra.mxu0 0
  %191 = vmatprep.subr.bf16.mxu0 0
  %192 = vmatpush1.bf16.msra.mxu0 0
  %193 = vmatprep.subr.bf16.mxu0 0
  %194 = vmatpush1.bf16.msra.mxu0 0
  %195 = vmatprep.subr.bf16.mxu0 0
  %196 = vmatpush1.bf16.msra.mxu0 0
  %197 = vmatprep.subr.bf16.mxu0 0
  %198 = vmatpush1.bf16.msra.mxu0 0
  %199 = vmatprep.subr.bf16.mxu0 0
  %200 = vmatpush1.bf16.msra.mxu0 0
  %201 = vmatprep.mubr.bf16.mxu0 0
  %202 = vmatmul.mubr.bf16.gmra.mrb[0].mxu0 %v97
  %v203 = vpop.f32.mrb[0].mxu0
  %v204 = vadd.f32 %v119, %v203
  %v205 = vpop.f32.mrb[0].mxu0
  %v206 = vpop.f32.mrb[0].mxu0
  %v207 = vpop.f32.mrb[0].mxu0
  %208 = vdwg.mxu0
  %v209 = vmax.f32 %v204, 0.0
  %v210 = vld [vmem:[%s5] sm:$0x1]
  %v212 = vlaneseq
  %v213 = vshrl.u32 %v212, 7
  %v214 = vsub.s32 0, %v213
  %v215 = vrot.slane %v210, %v214
  %v217 = vmul.f32 %v209, %v215
  %218 = vadd.xlane.f32.xlu0 %v217
  %v219 = vpop.xlane.xlu0 %218
  %s220 = sld [smem:[#allocation2]]
  %v221 = vstv %s220
  %v222 = vadd.f32 %v219, %v221
  %vm223 = vcmask 7168
  %224 = vst.msk [vmem:[%s7] sm:$0xff] %vm223, %v222
  // Predicated region
  $region30: #{qfunction_forward.1} parent=0 // pred_check
    _
  $region31: #{qfunction_forward.1} parent=0 // pred_check_branch
    %226 = sbr.rel (0) target = $region33
  $region32: #{qfunction_forward.1} parent=0 // pred_region
    _
  $region33: #{qfunction_forward.1} parent=0 // pred_fallthru
    _
  // Predicated region
  $region34: #{qfunction_forward.1} parent=0 // pred_check
    _
  $region35: #{qfunction_forward.1} parent=0 // pred_check_branch
    %228 = sbr.rel (0) target = $region37
  $region36: #{qfunction_forward.1} parent=0 // pred_region
    _
  $region37: #{qfunction_forward.1} parent=0 // pred_fallthru
    _

</llo_original>
